<compile_context>
chip_gen: v5e
topology: v5e:2x2
jax: 0.10.0
libtpu: 0.0.40
codegen_flags: <defaults>
</compile_context>

<pallas_src>
import functools

import jax
import jax.numpy as jnp
from jax import lax
from jax.experimental import pallas as pl
from jax.experimental.pallas import tpu as pltpu

GN_EPS = 1e-5
NUM_GROUPS = 32
VMEM_LIMIT = 48 * 1024 * 1024   # conservative scoped-VMEM cap (fits v7x's 64MiB)


# ----------------------------------------------------------------------------
# Channel tiling: tiles must divide C, contain whole GN groups, and keep the
# lane (last) dim either full-C or a multiple of 128.
# ----------------------------------------------------------------------------
def _pick_channel_tile(c, cpg, max_ct):
    if c <= max_ct:
        return c
    best = c
    t = 128
    while t <= max_ct:
        if c % t == 0 and t % cpg == 0:
            best = t
        t += 128
    return best


def _gn_group_map(ct, gt, cpg):
    # One-hot channel -> (tile-local) group assignment, contiguous groups.
    return (jnp.arange(ct)[:, None] // cpg
            == jnp.arange(gt)[None, :]).astype(jnp.float32)


# ----------------------------------------------------------------------------
# Shared GroupNorm (+affine, +residual, +ReLU) epilogue on the f32 accumulator.
# Two-pass stats (mean first, then centered variance) to avoid E[x^2]-E[x]^2
# cancellation; reductions over M ride the MXU via a (1,M) ones-row dot.
# ----------------------------------------------------------------------------
def _gn_finalize(acc, gmap, gamma, beta, res, *, inv_count, apply_relu):
    m = acc.shape[0]
    ones = jnp.ones((1, m), jnp.float32)
    scatter = (((1,), (1,)), ((), ()))          # (1,G) x (Ct,G)^T -> (1,Ct)

    ch_sum = jnp.dot(ones, acc, preferred_element_type=jnp.float32)        # (1,Ct)
    mean_g = jnp.dot(ch_sum, gmap, preferred_element_type=jnp.float32) * inv_count
    mean_c = lax.dot_general(mean_g, gmap, scatter,
                             preferred_element_type=jnp.float32)           # (1,Ct)

    centered = acc - mean_c
    ch_ss = jnp.dot(ones, centered * centered,
                    preferred_element_type=jnp.float32)                    # (1,Ct)
    var_g = jnp.dot(ch_ss, gmap, preferred_element_type=jnp.float32) * inv_count
    var_c = lax.dot_general(var_g, gmap, scatter,
                            preferred_element_type=jnp.float32)            # (1,Ct)

    scale_c = gamma * lax.rsqrt(var_c + GN_EPS)
    y = centered * scale_c + beta
    if res is not None:
        y = y + res.astype(jnp.float32)
    if apply_relu:
        y = jnp.maximum(y, 0.0)
    return y


# ----------------------------------------------------------------------------
# Kernel A: pre-formed patches (bf16) @ weights (bf16) + GN epilogue.
# Used for the strided 3x3 conv1 (im2col) and the 1x1 shortcut conv.
# ----------------------------------------------------------------------------
def _make_matmul_gn_kernel(*, inv_count, apply_relu, add_residual):
    def _body(p_ref, w_ref, gmap_ref, gamma_ref, beta_ref, res_ref, o_ref):
        acc = jnp.dot(p_ref[0], w_ref[...],
                      preferred_element_type=jnp.float32)                  # (M,Ct) f32
        res = res_ref[0] if add_residual else None
        o_ref[0] = _gn_finalize(acc, gmap_ref[...], gamma_ref[...],
                                beta_ref[...], res, inv_count=inv_count,
                                apply_relu=apply_relu).astype(o_ref.dtype)

    if add_residual:
        def kernel(p_ref, w_ref, gmap_ref, gamma_ref, beta_ref, res_ref, o_ref):
            _body(p_ref, w_ref, gmap_ref, gamma_ref, beta_ref, res_ref, o_ref)
    else:
        def kernel(p_ref, w_ref, gmap_ref, gamma_ref, beta_ref, o_ref):
            _body(p_ref, w_ref, gmap_ref, gamma_ref, beta_ref, None, o_ref)
    return kernel


# ----------------------------------------------------------------------------
# Kernel B: stride-1 3x3 conv directly from the padded NHWC image (bf16):
# nine shifted (M,Cin)@(Cin,Ct) MXU dots accumulated in f32, then GN epilogue.
# No im2col ever hits HBM.
# ----------------------------------------------------------------------------
def _make_conv3x3_gn_kernel(*, ho, wo, cin, ct, inv_count, apply_relu,
                            add_residual):
    m = ho * wo

    def _body(x_ref, w_ref, gmap_ref, gamma_ref, beta_ref, res_ref, o_ref):
        acc = jnp.zeros((m, ct), jnp.float32)
        for dy in range(3):
            for dx in range(3):
                tap = x_ref[0, dy:dy + ho, dx:dx + wo, :]      # (ho,wo,cin) bf16
                t = dy * 3 + dx
                acc = acc + jnp.dot(tap.reshape(m, cin),
                                    w_ref[t * cin:(t + 1) * cin, :],
                                    preferred_element_type=jnp.float32)
        res = res_ref[0] if add_residual else None
        o_ref[0] = _gn_finalize(acc, gmap_ref[...], gamma_ref[...],
                                beta_ref[...], res, inv_count=inv_count,
                                apply_relu=apply_relu).astype(o_ref.dtype)

    if add_residual:
        def kernel(x_ref, w_ref, gmap_ref, gamma_ref, beta_ref, res_ref, o_ref):
            _body(x_ref, w_ref, gmap_ref, gamma_ref, beta_ref, res_ref, o_ref)
    else:
        def kernel(x_ref, w_ref, gmap_ref, gamma_ref, beta_ref, o_ref):
            _body(x_ref, w_ref, gmap_ref, gamma_ref, beta_ref, None, o_ref)
    return kernel


# ----------------------------------------------------------------------------
# Shared pallas_call dispatcher: grid = (N, channel_tiles), both parallel.
# ----------------------------------------------------------------------------
def _fused_gn_call(kernel, lead_arg, lead_spec, w_flat, gamma, beta, residual,
                   *, n, m, c, ct, gt, cpg, out_dtype):
    gmap = _gn_group_map(ct, gt, cpg)
    in_specs = [
        lead_spec,                                                  # image/patches
        pl.BlockSpec((w_flat.shape[0], ct), lambda i, j: (0, j)),   # weights
        pl.BlockSpec((ct, gt), lambda i, j: (0, 0)),                # group map
        pl.BlockSpec((1, ct), lambda i, j: (0, j)),                 # gamma
        pl.BlockSpec((1, ct), lambda i, j: (0, j)),                 # beta
    ]
    args = [lead_arg, w_flat, gmap,
            gamma.reshape(1, c).astype(jnp.float32),
            beta.reshape(1, c).astype(jnp.float32)]
    if residual is not None:
        in_specs.append(pl.BlockSpec((1, m, ct), lambda i, j: (i, 0, j)))
        args.append(residual)

    return pl.pallas_call(
        kernel,
        out_shape=jax.ShapeDtypeStruct((n, m, c), out_dtype),
        grid=(n, c // ct),
        in_specs=in_specs,
        out_specs=pl.BlockSpec((1, m, ct), lambda i, j: (i, 0, j)),
        compiler_params=pltpu.CompilerParams(
            dimension_semantics=("parallel", "parallel"),
            vmem_limit_bytes=VMEM_LIMIT),
    )(*args)


def matmul_gn(patches, w_flat, gamma, beta, *, residual=None, apply_relu=False,
              out_dtype=jnp.float32, num_groups=NUM_GROUPS,
              max_channel_tile=256):
    """patches: (N, M, K) bf16, w_flat: (K, C) bf16 -> (N, M, C) out_dtype."""
    n, m, k = patches.shape
    c = w_flat.shape[1]
    assert c % num_groups == 0
    cpg = c // num_groups
    ct = _pick_channel_tile(c, cpg, max_channel_tile)
    gt = ct // cpg
    kernel = _make_matmul_gn_kernel(inv_count=1.0 / float(m * cpg),
                                    apply_relu=apply_relu,
                                    add_residual=residual is not None)
    lead_spec = pl.BlockSpec((1, m, k), lambda i, j: (i, 0, 0))
    return _fused_gn_call(kernel, patches, lead_spec, w_flat, gamma, beta,
                          residual, n=n, m=m, c=c, ct=ct, gt=gt, cpg=cpg,
                          out_dtype=out_dtype)


def conv3x3_gn(x_pad, w_flat, gamma, beta, *, residual=None, apply_relu=False,
               out_dtype=jnp.float32, num_groups=NUM_GROUPS,
               max_channel_tile=256):
    """x_pad: (N, H+2, W+2, Cin) bf16 (zero-padded), w_flat: (9*Cin, C) bf16."""
    n, hp, wp, cin = x_pad.shape
    ho, wo = hp - 2, wp - 2
    m = ho * wo
    c = w_flat.shape[1]
    assert w_flat.shape[0] == 9 * cin
    assert c % num_groups == 0
    cpg = c // num_groups
    ct = _pick_channel_tile(c, cpg, max_channel_tile)
    gt = ct // cpg
    kernel = _make_conv3x3_gn_kernel(ho=ho, wo=wo, cin=cin, ct=ct,
                                     inv_count=1.0 / float(m * cpg),
                                     apply_relu=apply_relu,
                                     add_residual=residual is not None)
    lead_spec = pl.BlockSpec((1, hp, wp, cin), lambda i, j: (i, 0, 0, 0))
    return _fused_gn_call(kernel, x_pad, lead_spec, w_flat, gamma, beta,
                          residual, n=n, m=m, c=c, ct=ct, gt=gt, cpg=cpg,
                          out_dtype=out_dtype)


# ----------------------------------------------------------------------------
# Plain-JAX glue: bf16 im2col, used ONLY for the strided conv1
# (inflation is 9/stride^2 there, and bytes are halved by bf16).
# ----------------------------------------------------------------------------
def im2col(x_nhwc, ksize, stride, pad):
    n, h, w, cin = x_nhwc.shape
    xp = jnp.pad(x_nhwc, ((0, 0), (pad, pad), (pad, pad), (0, 0)))
    ho = (h + 2 * pad - ksize) // stride + 1
    wo = (w + 2 * pad - ksize) // stride + 1
    cols = []
    for dy in range(ksize):
        for dx in range(ksize):
            cols.append(xp[:, dy:dy + stride * ho:stride,
                           dx:dx + stride * wo:stride, :])
    patches = jnp.concatenate(cols, axis=-1)           # (N, Ho, Wo, 9*Cin)
    return patches.reshape(n, ho * wo, ksize * ksize * cin), ho, wo


# ----------------------------------------------------------------------------
# BasicBlock forward (NCHW in / NCHW out, like the PyTorch module)
# ----------------------------------------------------------------------------
def basic_block_forward(x_nchw, params, *, stride, expansion=1,
                        max_channel_tile=256):
    x_f32 = jnp.transpose(x_nchw, (0, 2, 3, 1)).astype(jnp.float32)   # NHWC
    x = x_f32.astype(jnp.bfloat16)
    n, h, w, in_planes = x.shape
    planes = params["w1"].shape[-1]
    out_planes = planes * expansion
    has_shortcut = (stride != 1) or (in_planes != out_planes)

    # conv1 (3x3, stride) + gn1 + relu  ->  bf16 intermediate
    w1 = params["w1"].reshape(-1, planes).astype(jnp.bfloat16)
    if stride == 1:
        xpad = jnp.pad(x, ((0, 0), (1, 1), (1, 1), (0, 0)))
        ho, wo = h, w
        h1 = conv3x3_gn(xpad, w1, params["g1"], params["b1"],
                        apply_relu=True, out_dtype=jnp.bfloat16,
                        max_channel_tile=max_channel_tile)
    else:
        p1, ho, wo = im2col(x, 3, stride, 1)
        h1 = matmul_gn(p1, w1, params["g1"], params["b1"],
                       apply_relu=True, out_dtype=jnp.bfloat16,
                       max_channel_tile=max_channel_tile)
    h1_img = h1.reshape(n, ho, wo, planes)

    # shortcut branch
    if has_shortcut:
        xs = x[:, ::stride, ::stride, :]
        psc = xs.reshape(n, ho * wo, in_planes)
        wsc = params["wsc"].reshape(in_planes, out_planes).astype(jnp.bfloat16)
        sc = matmul_gn(psc, wsc, params["gsc"], params["bsc"],
                       apply_relu=False, out_dtype=jnp.bfloat16,
                       max_channel_tile=max_channel_tile)
    else:
        sc = x_f32.reshape(n, ho * wo, out_planes)   # exact identity residual

    # conv2 (3x3, stride 1) + gn2 + shortcut + relu (all fused, no im2col)
    w2 = params["w2"].reshape(-1, out_planes).astype(jnp.bfloat16)
    h1_pad = jnp.pad(h1_img, ((0, 0), (1, 1), (1, 1), (0, 0)))
    out = conv3x3_gn(h1_pad, w2, params["g2"], params["b2"],
                     residual=sc, apply_relu=True, out_dtype=jnp.float32,
                     max_channel_tile=max_channel_tile)

    out = out.reshape(n, ho, wo, out_planes)
    return jnp.transpose(out, (0, 3, 1, 2))                       # NCHW


# ----------------------------------------------------------------------------
# Pure-JAX f32 reference (for correctness check)
# ----------------------------------------------------------------------------
def _group_norm_ref(x_nhwc, gamma, beta, groups=NUM_GROUPS, eps=GN_EPS):
    n, h, w, c = x_nhwc.shape
    xg = x_nhwc.reshape(n, h, w, groups, c // groups)
    mean = xg.mean(axis=(1, 2, 4), keepdims=True)
    var = ((xg - mean) ** 2).mean(axis=(1, 2, 4), keepdims=True)
    xn = ((xg - mean) / jnp.sqrt(var + eps)).reshape(n, h, w, c)
    return xn * gamma + beta


def basic_block_reference(x_nchw, params, *, stride, expansion=1):
    x = jnp.transpose(x_nchw, (0, 2, 3, 1)).astype(jnp.float32)
    dn = ("NHWC", "HWIO", "NHWC")
    conv = functools.partial(lax.conv_general_dilated, dimension_numbers=dn)

    in_planes = x.shape[-1]
    planes = params["w1"].shape[-1]
    out_planes = planes * expansion
    has_shortcut = (stride != 1) or (in_planes != out_planes)

    h1 = conv(x, params["w1"], (stride, stride), ((1, 1), (1, 1)))
    h1 = jax.nn.relu(_group_norm_ref(h1, params["g1"], params["b1"]))
    h2 = conv(h1, params["w2"], (1, 1), ((1, 1), (1, 1)))
    h2 = _group_norm_ref(h2, params["g2"], params["b2"])
    if has_shortcut:
        sc = conv(x, params["wsc"], (stride, stride), ((0, 0), (0, 0)))
        sc = _group_norm_ref(sc, params["gsc"], params["bsc"])
    else:
        sc = x
    out = jax.nn.relu(h2 + sc)
    return jnp.transpose(out, (0, 3, 1, 2))


# ----------------------------------------------------------------------------
# Deterministic parameter init (weights stored HWIO, f32 master copies)
# ----------------------------------------------------------------------------
def init_params(key, in_planes, planes, expansion=1):
    out_planes = planes * expansion
    ks = jax.random.split(key, 8)
    return {
        "w1": 0.05 * jax.random.normal(ks[0], (3, 3, in_planes, planes), jnp.float32),
        "g1": 1.0 + 0.1 * jax.random.normal(ks[1], (planes,), jnp.float32),
        "b1": 0.1 * jax.random.normal(ks[2], (planes,), jnp.float32),
        "w2": 0.05 * jax.random.normal(ks[3], (3, 3, planes, out_planes), jnp.float32),
        "g2": 1.0 + 0.1 * jax.random.normal(ks[4], (out_planes,), jnp.float32),
        "b2": 0.1 * jax.random.normal(ks[5], (out_planes,), jnp.float32),
        "wsc": 0.05 * jax.random.normal(ks[6], (1, 1, in_planes, out_planes), jnp.float32),
        "gsc": 1.0 + 0.1 * jax.random.normal(ks[7], (out_planes,), jnp.float32),
        "bsc": jnp.zeros((out_planes,), jnp.float32),
    }


if __name__ == "__main__":
    key = jax.random.PRNGKey(0)
    k1, k2, k3, k4 = jax.random.split(key, 4)

    # Config A: stride-2 down-sampling block. Exercises the bf16 im2col conv1,
    # the 1x1-conv+GN shortcut kernel, and the fused no-im2col 3x3 conv2.
    N, C_IN, PLANES, H, W, STRIDE = 2, 32, 64, 16, 16, 2
    xA = jax.random.normal(k1, (N, C_IN, H, W), jnp.float32)
    pA = init_params(k2, C_IN, PLANES)
    outA = jax.block_until_ready(basic_block_forward(xA, pA, stride=STRIDE))
    refA = jax.block_until_ready(basic_block_reference(xA, pA, stride=STRIDE))
    assert outA.shape == (N, PLANES, H // STRIDE, W // STRIDE), outA.shape
    errA = float(jnp.max(jnp.abs(outA - refA)))
    assert jnp.allclose(outA, refA, atol=5e-2, rtol=5e-2), errA

    # Config B: stride-1 identity-shortcut block with C=256 and a forced
    # 128-wide channel tile -> grid (N, 2): exercises the no-im2col conv1 path,
    # the identity residual, and multi channel-tile (megacore-parallel) grids.
    N2, C2, H2, W2 = 2, 256, 8, 8
    xB = jax.random.normal(k3, (N2, C2, H2, W2), jnp.float32)
    pB = init_params(k4, C2, C2)
    outB = jax.block_until_ready(
        basic_block_forward(xB, pB, stride=1, max_channel_tile=128))
    refB = jax.block_until_ready(basic_block_reference(xB, pB, stride=1))
    assert outB.shape == (N2, C2, H2, W2), outB.shape
    errB = float(jnp.max(jnp.abs(outB - refB)))
    assert jnp.allclose(outB, refB, atol=5e-2, rtol=5e-2), errB

    print("KERNEL_OK")
</pallas_src>

<mosaic_0001>
module attributes {stable_mosaic.version = 11 : i64} {
  func.func @kernel(%arg0: i32, %arg1: i32, %arg2: memref<1x64x288xbf16, #tpu.memory_space<vmem>>, %arg3: memref<288x64xbf16, #tpu.memory_space<vmem>>, %arg4: memref<64x32xf32, #tpu.memory_space<vmem>>, %arg5: memref<1x64xf32, #tpu.memory_space<vmem>>, %arg6: memref<1x64xf32, #tpu.memory_space<vmem>>, %arg7: memref<1x64x64xbf16, #tpu.memory_space<vmem>>) attributes {dimension_semantics = [#tpu.dimension_semantics<parallel>, #tpu.dimension_semantics<parallel>], iteration_bounds = array<i64: 2, 1>, scalar_prefetch = 0 : i64, scratch_operands = 0 : i64, tpu.core_type = #tpu.core_type<tc>, window_params = [{transform_indices = @transform_0, window_bounds = array<i64: 1, 64, 288>}, {transform_indices = @transform_1, window_bounds = array<i64: 288, 64>}, {pipeline_mode = #tpu.pipeline_mode<synchronous>, transform_indices = @transform_2, window_bounds = array<i64: 64, 32>}, {transform_indices = @transform_3, window_bounds = array<i64: 1, 64>}, {transform_indices = @transform_4, window_bounds = array<i64: 1, 64>}, {transform_indices = @transform_5, window_bounds = array<i64: 1, 64, 64>}]} {
    %c0 = arith.constant 0 : index
    %c0_0 = arith.constant 0 : index
    %c0_1 = arith.constant 0 : index
    %0 = vector.load %arg2[%c0, %c0_0, %c0_1] : memref<1x64x288xbf16, #tpu.memory_space<vmem>>, vector<1x64x288xbf16>
    %1 = vector.shape_cast %0 : vector<1x64x288xbf16> to vector<64x288xbf16>
    %c0_2 = arith.constant 0 : index
    %c0_3 = arith.constant 0 : index
    %2 = vector.load %arg3[%c0_2, %c0_3] : memref<288x64xbf16, #tpu.memory_space<vmem>>, vector<288x64xbf16>
    %cst = arith.constant dense<0.000000e+00> : vector<64x64xf32>
    %3 = tpu.matmul %1, %2, %cst {dimension_numbers = #tpu.dot_dimension_numbers<[1], [0], [0], [1], [0, 0, 1, 1], [], []>} : vector<64x288xbf16>, vector<288x64xbf16>, vector<64x64xf32> -> vector<64x64xf32>
    %c0_4 = arith.constant 0 : index
    %c0_5 = arith.constant 0 : index
    %4 = vector.load %arg4[%c0_4, %c0_5] : memref<64x32xf32, #tpu.memory_space<vmem>>, vector<64x32xf32>
    %c0_6 = arith.constant 0 : index
    %c0_7 = arith.constant 0 : index
    %5 = vector.load %arg5[%c0_6, %c0_7] : memref<1x64xf32, #tpu.memory_space<vmem>>, vector<1x64xf32>
    %c0_8 = arith.constant 0 : index
    %c0_9 = arith.constant 0 : index
    %6 = vector.load %arg6[%c0_8, %c0_9] : memref<1x64xf32, #tpu.memory_space<vmem>>, vector<1x64xf32>
    %cst_10 = arith.constant 1.000000e+00 : f32
    %7 = vector.broadcast %cst_10 : f32 to vector<1x64xf32>
    %cst_11 = arith.constant dense<0.000000e+00> : vector<1x64xf32>
    %8 = tpu.matmul %7, %3, %cst_11 {dimension_numbers = #tpu.dot_dimension_numbers<[1], [0], [0], [1], [0, 0, 1, 1], [], []>} : vector<1x64xf32>, vector<64x64xf32>, vector<1x64xf32> -> vector<1x64xf32>
    %cst_12 = arith.constant dense<0.000000e+00> : vector<1x32xf32>
    %9 = tpu.matmul %8, %4, %cst_12 {dimension_numbers = #tpu.dot_dimension_numbers<[1], [0], [0], [1], [0, 0, 1, 1], [], []>} : vector<1x64xf32>, vector<64x32xf32>, vector<1x32xf32> -> vector<1x32xf32>
    %cst_13 = arith.constant 7.812500e-03 : f32
    %10 = vector.broadcast %cst_13 : f32 to vector<1x32xf32>
    %11 = arith.mulf %9, %10 : vector<1x32xf32>
    %cst_14 = arith.constant dense<0.000000e+00> : vector<1x64xf32>
    %12 = tpu.matmul %11, %4, %cst_14 {dimension_numbers = #tpu.dot_dimension_numbers<[1], [1], [0], [0], [0, 0, 1, 0], [], []>} : vector<1x32xf32>, vector<64x32xf32>, vector<1x64xf32> -> vector<1x64xf32>
    %13 = vector.broadcast %12 : vector<1x64xf32> to vector<64x64xf32>
    %14 = arith.subf %3, %13 : vector<64x64xf32>
    %15 = arith.mulf %14, %14 : vector<64x64xf32>
    %cst_15 = arith.constant dense<0.000000e+00> : vector<1x64xf32>
    %16 = tpu.matmul %7, %15, %cst_15 {dimension_numbers = #tpu.dot_dimension_numbers<[1], [0], [0], [1], [0, 0, 1, 1], [], []>} : vector<1x64xf32>, vector<64x64xf32>, vector<1x64xf32> -> vector<1x64xf32>
    %cst_16 = arith.constant dense<0.000000e+00> : vector<1x32xf32>
    %17 = tpu.matmul %16, %4, %cst_16 {dimension_numbers = #tpu.dot_dimension_numbers<[1], [0], [0], [1], [0, 0, 1, 1], [], []>} : vector<1x64xf32>, vector<64x32xf32>, vector<1x32xf32> -> vector<1x32xf32>
    %cst_17 = arith.constant 7.812500e-03 : f32
    %18 = vector.broadcast %cst_17 : f32 to vector<1x32xf32>
    %19 = arith.mulf %17, %18 : vector<1x32xf32>
    %cst_18 = arith.constant dense<0.000000e+00> : vector<1x64xf32>
    %20 = tpu.matmul %19, %4, %cst_18 {dimension_numbers = #tpu.dot_dimension_numbers<[1], [1], [0], [0], [0, 0, 1, 0], [], []>} : vector<1x32xf32>, vector<64x32xf32>, vector<1x64xf32> -> vector<1x64xf32>
    %cst_19 = arith.constant 9.99999974E-6 : f32
    %21 = vector.broadcast %cst_19 : f32 to vector<1x64xf32>
    %22 = arith.addf %20, %21 : vector<1x64xf32>
    %23 = math.rsqrt %22 : vector<1x64xf32>
    %24 = arith.mulf %5, %23 : vector<1x64xf32>
    %25 = vector.broadcast %24 : vector<1x64xf32> to vector<64x64xf32>
    %26 = arith.mulf %14, %25 : vector<64x64xf32>
    %27 = vector.broadcast %6 : vector<1x64xf32> to vector<64x64xf32>
    %28 = arith.addf %26, %27 : vector<64x64xf32>
    %cst_20 = arith.constant 0.000000e+00 : f32
    %29 = vector.broadcast %cst_20 : f32 to vector<64x64xf32>
    %30 = arith.maximumf %28, %29 : vector<64x64xf32>
    %31 = arith.truncf %30 : vector<64x64xf32> to vector<64x64xbf16>
    %c0_21 = arith.constant 0 : index
    %c0_22 = arith.constant 0 : index
    %c0_23 = arith.constant 0 : index
    %32 = vector.load %arg7[%c0_21, %c0_22, %c0_23] : memref<1x64x64xbf16, #tpu.memory_space<vmem>>, vector<1x64x64xbf16>
    %33 = vector.shape_cast %32 : vector<1x64x64xbf16> to vector<64x64xbf16>
    %34 = vector.shape_cast %31 : vector<64x64xbf16> to vector<1x64x64xbf16>
    tpu.vector_store %arg7[%c0_21, %c0_22, %c0_23], %34 {strides = array<i32>} : memref<1x64x64xbf16, #tpu.memory_space<vmem>>, vector<1x64x64xbf16>,
    return
  }
  func.func @transform_0(%arg0: i32, %arg1: i32) -> (i32, i32, i32) {
    %c0_i32 = arith.constant 0 : i32
    %c0_i32_0 = arith.constant 0 : i32
    %c0_i32_1 = arith.constant 0 : i32
    return %arg0, %c0_i32, %c0_i32_0 : i32, i32, i32
  }
  func.func @transform_1(%arg0: i32, %arg1: i32) -> (i32, i32) {
    %c0_i32 = arith.constant 0 : i32
    %c0_i32_0 = arith.constant 0 : i32
    return %c0_i32, %arg1 : i32, i32
  }
  func.func @transform_2(%arg0: i32, %arg1: i32) -> (i32, i32) {
    %c0_i32 = arith.constant 0 : i32
    %c0_i32_0 = arith.constant 0 : i32
    %c0_i32_1 = arith.constant 0 : i32
    return %c0_i32, %c0_i32_0 : i32, i32
  }
  func.func @transform_3(%arg0: i32, %arg1: i32) -> (i32, i32) {
    %c0_i32 = arith.constant 0 : i32
    %c0_i32_0 = arith.constant 0 : i32
    return %c0_i32, %arg1 : i32, i32
  }
  func.func @transform_4(%arg0: i32, %arg1: i32) -> (i32, i32) {
    %c0_i32 = arith.constant 0 : i32
    %c0_i32_0 = arith.constant 0 : i32
    return %c0_i32, %arg1 : i32, i32
  }
  func.func @transform_5(%arg0: i32, %arg1: i32) -> (i32, i32, i32) {
    %c0_i32 = arith.constant 0 : i32
    %c0_i32_0 = arith.constant 0 : i32
    return %arg0, %c0_i32, %arg1 : i32, i32, i32
  }
}

</mosaic_0001>

<llo_original>
// kernel: tpu_custom_call.1
$region0: #{tpu_custom_call.1}
  #allocation0 [shape = 'u32[]', space=smem, size = 0x4, offset = 0x4, fixed_abs, tag = 'smem constant byte address 0x4 - core index']
  #allocation1 [shape = 'u32[72,128]{1,0:T(1,128)}', space=vmem, size = 0x9000, scoped, tag = 'internal scratch']
  %s0 = inlined_call_operand.vmem [shape: bf16[2,64,288], index: 0, kind: input, shape index: {}]
  %s1 = inlined_call_operand.vmem [shape: bf16[288,64], index: 1, kind: input, shape index: {}]
  %s2 = inlined_call_operand.vmem [shape: f32[64,32], index: 2, kind: input, shape index: {}]
  %s3 = inlined_call_operand.vmem [shape: f32[1,64], index: 3, kind: input, shape index: {}]
  %s4 = inlined_call_operand.vmem [shape: f32[1,64], index: 4, kind: input, shape index: {}]
  %s5 = inlined_call_operand.hbm [shape: bf16[2,64,64], index: 5, kind: output, shape index: {}]
  %s6 = sld [smem:[#allocation0]]
  $region53: #{tpu_custom_call.1} parent=0
    _
  %s8 = ssub.s32 1, %s6
  %s9 = scalar_select 0, %s8, %s6
  $region1: #{tpu_custom_call.1} parent=0
    #allocation2 [shape = 'u8[32768]{0}', space=vmem, size = 0x8000, scoped, tag = 'output window, operand 0']
    #allocation3 [shape = 's32[2]{0}', space=sflag, size = 0x8, scoped, tag = 'scoped memory for tpu_custom_call.1']
    %10 = vsyncpa [#allocation3], 0
    %s11 = scalar_lea.sflag [#allocation3], 1
    %12 = vsyncpa %s11, 0
    loop: start=0, step=1, limit=4
    $region2: #{tpu_custom_call.1} parent=1 // loop_pre_header
      _
    $region3: #{tpu_custom_call.1} parent=1 // loop_header
      %s14 = sphi 0, %s18
      %p15 = scmp.ge.s32.totalorder %s14, 4
      %s21 = sphi 0, %s33
      %s22 = sphi 0, %s29
      %s23 = sphi 0, %s21
      %s24 = sphi 0, %s22
      %s25 = sphi 0, %s23
      %s26 = sphi 0, %s24
      %s36 = sphi 0, %s38
      %s39 = sphi 0, %s36
      %s40 = sphi 0, %s39
      %s56 = sphi 0, %s40
      %s62 = sphi 0, %s64
      %s65 = sphi 0, %s62
      %s66 = sphi 0, %s65
      %s82 = sphi 0, %s66
      %s86 = sphi 0, %s86
      %s88 = sphi 0, %s86
      %s89 = sphi 0, %s88
      %s103 = sphi 0, %s89
      %s109 = sphi 0, %s111
      %s112 = sphi 0, %s109
      %s113 = sphi 0, %s112
      %s129 = sphi 0, %s113
      %s135 = sphi 0, %s137
      %s138 = sphi 0, %s135
      %s139 = sphi 0, %s138
      %s155 = sphi 0, %s139
      %s163 = sphi 0, %s165
      %s166 = sphi 0, %s163
      %s167 = sphi 0, %s166
      %s183 = sphi 0, %s167
    $region4: #{tpu_custom_call.1} parent=1 // loop_header_branch
      %17 = sbr.rel (%p15) target = $region8
    $region5: #{tpu_custom_call.1} parent=1 // loop_body
      %s19 = ssub.s32 %s14, 1
      %s20 = ssub.s32 %s14, 2
      %s27 = sadd.s32 1, %s22
      %p28 = scmp.ge.s32.totalorder %s27, 1
      %s29 = scalar_select %p28, 0, %s27
      %s30 = sadd.s32 1, %s21
      %s31 = scalar_select %p28, %s30, %s21
      %p32 = scmp.ge.s32.totalorder %s31, 2
      %s33 = scalar_select %p32, 0, %s31
      %s34 = ssub.s32 %s21, %s33
      %p35 = scmp.eq.s32.totalorder %s34, 0
      %s37 = sadd.s32 %s36, 1
      %s38 = scalar_select %p35, %s36, %s37
      %p41 = pneg %p35
      %p42 = scmp.eq.s32.totalorder %s14, 1
      %p43 = por %p41, %p42
      %p44 = scmp.ne.s32.totalorder %s36, %s39
      %p45 = scmp.eq.s32.totalorder %s14, 0
      %p46 = por %p44, %p45
      %p47 = scmp.ne.s32.totalorder %s36, %s39
      %p48 = scmp.eq.s32.totalorder %s19, 1
      %p49 = por %p47, %p48
      %p50 = scmp.ne.s32.totalorder %s39, %s40
      %p51 = scmp.eq.s32.totalorder %s19, 0
      %p52 = por %p50, %p51
      %p53 = scmp.ne.s32.totalorder %s39, %s40
      %p54 = scmp.eq.s32.totalorder %s20, 1
      %p55 = por %p53, %p54
      %p57 = scmp.ne.s32.totalorder %s40, %s56
      %p58 = scmp.eq.s32.totalorder %s20, 0
      %p59 = por %p57, %p58
      %s60 = ssub.s32 %s22, %s29
      %p61 = scmp.eq.s32.totalorder %s60, 0
      %s63 = sadd.s32 %s62, 1
      %s64 = scalar_select %p61, %s62, %s63
      %p67 = pneg %p61
      %p68 = scmp.eq.s32.totalorder %s14, 1
      %p69 = por %p67, %p68
      %p70 = scmp.ne.s32.totalorder %s62, %s65
      %p71 = scmp.eq.s32.totalorder %s14, 0
      %p72 = por %p70, %p71
      %p73 = scmp.ne.s32.totalorder %s62, %s65
      %p74 = scmp.eq.s32.totalorder %s19, 1
      %p75 = por %p73, %p74
      %p76 = scmp.ne.s32.totalorder %s65, %s66
      %p77 = scmp.eq.s32.totalorder %s19, 0
      %p78 = por %p76, %p77
      %p79 = scmp.ne.s32.totalorder %s65, %s66
      %p80 = scmp.eq.s32.totalorder %s20, 1
      %p81 = por %p79, %p80
      %p83 = scmp.ne.s32.totalorder %s66, %s82
      %p84 = scmp.eq.s32.totalorder %s20, 0
      %p85 = por %p83, %p84
      %s87 = sadd.s32 %s86, 1
      %p90 = scmp.eq.s32.totalorder %s14, 1
      %p91 = scmp.ne.s32.totalorder %s86, %s88
      %p92 = scmp.eq.s32.totalorder %s14, 0
      %p93 = por %p91, %p92
      %p94 = scmp.ne.s32.totalorder %s86, %s88
      %p95 = scmp.eq.s32.totalorder %s19, 1
      %p96 = por %p94, %p95
      %p97 = scmp.ne.s32.totalorder %s88, %s89
      %p98 = scmp.eq.s32.totalorder %s19, 0
      %p99 = por %p97, %p98
      %p100 = scmp.ne.s32.totalorder %s88, %s89
      %p101 = scmp.eq.s32.totalorder %s20, 1
      %p102 = por %p100, %p101
      %p104 = scmp.ne.s32.totalorder %s89, %s103
      %p105 = scmp.eq.s32.totalorder %s20, 0
      %p106 = por %p104, %p105
      %s107 = ssub.s32 %s22, %s29
      %p108 = scmp.eq.s32.totalorder %s107, 0
      %s110 = sadd.s32 %s109, 1
      %s111 = scalar_select %p108, %s109, %s110
      %p114 = pneg %p108
      %p115 = scmp.eq.s32.totalorder %s14, 1
      %p116 = por %p114, %p115
      %p117 = scmp.ne.s32.totalorder %s109, %s112
      %p118 = scmp.eq.s32.totalorder %s14, 0
      %p119 = por %p117, %p118
      %p120 = scmp.ne.s32.totalorder %s109, %s112
      %p121 = scmp.eq.s32.totalorder %s19, 1
      %p122 = por %p120, %p121
      %p123 = scmp.ne.s32.totalorder %s112, %s113
      %p124 = scmp.eq.s32.totalorder %s19, 0
      %p125 = por %p123, %p124
      %p126 = scmp.ne.s32.totalorder %s112, %s113
      %p127 = scmp.eq.s32.totalorder %s20, 1
      %p128 = por %p126, %p127
      %p130 = scmp.ne.s32.totalorder %s113, %s129
      %p131 = scmp.eq.s32.totalorder %s20, 0
      %p132 = por %p130, %p131
      %s133 = ssub.s32 %s22, %s29
      %p134 = scmp.eq.s32.totalorder %s133, 0
      %s136 = sadd.s32 %s135, 1
      %s137 = scalar_select %p134, %s135, %s136
      %p140 = pneg %p134
      %p141 = scmp.eq.s32.totalorder %s14, 1
      %p142 = por %p140, %p141
      %p143 = scmp.ne.s32.totalorder %s135, %s138
      %p144 = scmp.eq.s32.totalorder %s14, 0
      %p145 = por %p143, %p144
      %p146 = scmp.ne.s32.totalorder %s135, %s138
      %p147 = scmp.eq.s32.totalorder %s19, 1
      %p148 = por %p146, %p147
      %p149 = scmp.ne.s32.totalorder %s138, %s139
      %p150 = scmp.eq.s32.totalorder %s19, 0
      %p151 = por %p149, %p150
      %p152 = scmp.ne.s32.totalorder %s138, %s139
      %p153 = scmp.eq.s32.totalorder %s20, 1
      %p154 = por %p152, %p153
      %p156 = scmp.ne.s32.totalorder %s139, %s155
      %p157 = scmp.eq.s32.totalorder %s20, 0
      %p158 = por %p156, %p157
      %s159 = ssub.s32 %s21, %s33
      %s160 = ssub.s32 %s22, %s29
      %s161 = sor.u32 %s159, %s160
      %p162 = scmp.eq.s32.totalorder %s161, 0
      %s164 = sadd.s32 %s163, 1
      %s165 = scalar_select %p162, %s163, %s164
      %p168 = pneg %p162
      %p169 = scmp.eq.s32.totalorder %s14, 1
      %p170 = por %p168, %p169
      %p171 = scmp.ne.s32.totalorder %s163, %s166
      %p172 = scmp.eq.s32.totalorder %s14, 0
      %p173 = por %p171, %p172
      %p174 = scmp.ne.s32.totalorder %s163, %s166
      %p175 = scmp.eq.s32.totalorder %s19, 1
      %p176 = por %p174, %p175
      %p177 = scmp.ne.s32.totalorder %s166, %s167
      %p178 = scmp.eq.s32.totalorder %s19, 0
      %p179 = por %p177, %p178
      %p180 = scmp.ne.s32.totalorder %s166, %s167
      %p181 = scmp.eq.s32.totalorder %s20, 1
      %p182 = por %p180, %p181
      %p184 = scmp.ne.s32.totalorder %s167, %s183
      %p185 = scmp.eq.s32.totalorder %s20, 0
      %p186 = por %p184, %p185
      %p187 = scmp.le.s32.totalorder 1, %s14
      %p188 = scmp.lt.s32.totalorder %s14, 3
      %p189 = pnand %p187, %p188
      %p190 = pneg %p189
      // Predicated region
      $region9: #{tpu_custom_call.1} parent=5 // pred_check
        _
      $region10: #{tpu_custom_call.1} parent=5 // pred_check_branch
        %192 = sbr.rel (%p189) target = $region12
      $region11: #{tpu_custom_call.1} parent=5 // pred_region
        %s193 = ssub.s32 %s14, 1
        // Predicated region
        $region13: #{tpu_custom_call.1} parent=11 // pred_check
          %p194 = pneg %p78
        $region14: #{tpu_custom_call.1} parent=11 // pred_check_branch
          %196 = sbr.rel (%p194) target = $region16
        $region15: #{tpu_custom_call.1} parent=11 // pred_region
          %p197 = scmp.lt.s32.totalorder %s24, 0
          %s198 = scalar_select %p197, %s24, 0
          %s199 = smul.addr %s198, 4
          %s200 = scalar_lea.vmem %s1, %s199
        $region16: #{tpu_custom_call.1} parent=11 // pred_fallthru
          _
        // Predicated region
        $region17: #{tpu_custom_call.1} parent=11 // pred_check
          %p201 = pneg %p99
        $region18: #{tpu_custom_call.1} parent=11 // pred_check_branch
          %203 = sbr.rel (%p201) target = $region20
        $region19: #{tpu_custom_call.1} parent=11 // pred_region
          _
        $region20: #{tpu_custom_call.1} parent=11 // pred_fallthru
          _
        // Predicated region
        $region21: #{tpu_custom_call.1} parent=11 // pred_check
          %p204 = pneg %p125
        $region22: #{tpu_custom_call.1} parent=11 // pred_check_branch
          %206 = sbr.rel (%p204) target = $region24
        $region23: #{tpu_custom_call.1} parent=11 // pred_region
          %p207 = scmp.lt.s32.totalorder %s24, 0
          %s208 = scalar_select %p207, %s24, 0
          %s209 = scalar_lea.vmem %s3, %s208
        $region24: #{tpu_custom_call.1} parent=11 // pred_fallthru
          _
        // Predicated region
        $region25: #{tpu_custom_call.1} parent=11 // pred_check
          %p210 = pneg %p151
        $region26: #{tpu_custom_call.1} parent=11 // pred_check_branch
          %212 = sbr.rel (%p210) target = $region28
        $region27: #{tpu_custom_call.1} parent=11 // pred_region
          %p213 = scmp.lt.s32.totalorder %s24, 0
          %s214 = scalar_select %p213, %s24, 0
          %s215 = scalar_lea.vmem %s4, %s214
        $region28: #{tpu_custom_call.1} parent=11 // pred_fallthru
          _
      $region12: #{tpu_custom_call.1} parent=5 // pred_fallthru
        _
      %p216 = scmp.lt.s32.totalorder %s14, 2
      // Predicated region
      $region29: #{tpu_custom_call.1} parent=5 // pred_check
        %p217 = pneg %p216
      $region30: #{tpu_custom_call.1} parent=5 // pred_check_branch
        %219 = sbr.rel (%p217) target = $region32
      $region31: #{tpu_custom_call.1} parent=5 // pred_region
        // Predicated region
        $region33: #{tpu_custom_call.1} parent=31 // pred_check
          %p220 = pneg %p46
        $region34: #{tpu_custom_call.1} parent=31 // pred_check_branch
          %222 = sbr.rel (%p220) target = $region36
        $region35: #{tpu_custom_call.1} parent=31 // pred_region
          %p223 = scmp.lt.s32.totalorder %s21, 1
          %s224 = scalar_select %p223, %s21, 1
          %s225 = smul.addr %s224, 24
          %s226 = smul.addr %s225, 4
          %s227 = scalar_lea.vmem %s0, %s226
        $region36: #{tpu_custom_call.1} parent=31 // pred_fallthru
          _
      $region32: #{tpu_custom_call.1} parent=5 // pred_fallthru
        _
      %p228 = scmp.le.s32.totalorder 1, %s14
      %p229 = scmp.lt.s32.totalorder %s14, 3
      %p230 = pnand %p228, %p229
      %p231 = pneg %p230
      // Predicated region
      $region37: #{tpu_custom_call.1} parent=5 // pred_check
        _
      $region38: #{tpu_custom_call.1} parent=5 // pred_check_branch
        %233 = sbr.rel (%p230) target = $region40
      $region39: #{tpu_custom_call.1} parent=5 // pred_region
        %s234 = ssub.s32 %s14, 1
        %p235 = scmp.lt.s32.totalorder %s23, 1
        %s236 = scalar_select %p235, %s23, 1
        %s237 = smul.addr %s236, 24
        %s238 = smul.addr %s237, 4
        %s239 = scalar_lea.vmem %s0, %s238
        %p240 = pneg %p52
        %p241 = pneg %p49
        %p242 = scmp.lt.s32.totalorder %s24, 0
        %s243 = scalar_select %p242, %s24, 0
        %s244 = smul.addr %s243, 4
        %s245 = scalar_lea.vmem %s1, %s244
        %p246 = pneg %p78
        %p247 = pneg %p75
        %p248 = pneg %p99
        %p249 = pneg %p96
        %p250 = scmp.lt.s32.totalorder %s24, 0
        %s251 = scalar_select %p250, %s24, 0
        %s252 = scalar_lea.vmem %s3, %s251
        %p253 = pneg %p125
        %p254 = pneg %p122
        %p255 = scmp.lt.s32.totalorder %s24, 0
        %s256 = scalar_select %p255, %s24, 0
        %s257 = scalar_lea.vmem %s4, %s256
        %p258 = pneg %p151
        %p259 = pneg %p148
        %p260 = pneg %p179
        %p261 = pneg %p176
        %s262 = sand.u32 %s166, 1
        %s263 = scalar_lea.sflag [#allocation3], %s262
        %s264 = sand.u32 %s166, 1
        %s265 = smul.addr %s264, 32
        %s266 = scalar_lea.vmem [#allocation2], %s265
        %p267 = scmp.lt.s32.totalorder %s23, 1
        %s268 = scalar_select %p267, %s23, 1
        %s269 = smul.addr %s268, 24
        %s270 = smul.addr %s269, 4
        %s271 = scalar_lea.vmem %s0, %s270
        %p272 = scmp.lt.s32.totalorder %s24, 0
        %s273 = scalar_select %p272, %s24, 0
        %s274 = smul.addr %s273, 4
        %s275 = scalar_lea.vmem %s1, %s274
        %p276 = scmp.lt.s32.totalorder %s24, 0
        %s277 = scalar_select %p276, %s24, 0
        %s278 = scalar_lea.vmem %s3, %s277
        %p279 = scmp.lt.s32.totalorder %s24, 0
        %s280 = scalar_select %p279, %s24, 0
        %s281 = scalar_lea.vmem %s4, %s280
        %v283 = vld [vmem:[%s271] sm:$0xff]
        %v284 = vld [vmem:[%s271 + $0x8] sm:$0xf]
        %v285 = vld [vmem:[%s271 + $0xc] sm:$0xff]
        %v286 = vld [vmem:[%s271 + $0x14] sm:$0xf]
        %v287 = vld [vmem:[%s271 + $0x18] sm:$0xff]
        %v288 = vld [vmem:[%s271 + $0x20] sm:$0xf]
        %v289 = vld [vmem:[%s271 + $0x24] sm:$0xff]
        %v290 = vld [vmem:[%s271 + $0x2c] sm:$0xf]
        %v291 = vld [vmem:[%s271 + $0x30] sm:$0xff]
        %v292 = vld [vmem:[%s271 + $0x38] sm:$0xf]
        %v293 = vld [vmem:[%s271 + $0x3c] sm:$0xff]
        %v294 = vld [vmem:[%s271 + $0x44] sm:$0xf]
        %v295 = vld [vmem:[%s271 + $0x48] sm:$0xff]
        %v296 = vld [vmem:[%s271 + $0x50] sm:$0xf]
        %v297 = vld [vmem:[%s271 + $0x54] sm:$0xff]
        %v298 = vld [vmem:[%s271 + $0x5c] sm:$0xf]
        %v299 = vld [vmem:[%s275] sm:$0xf]
        %v300 = vld [vmem:[%s275 + $0x4] sm:$0xf]
        %v301 = vld [vmem:[%s275 + $0x8] sm:$0xf]
        %v302 = vld [vmem:[%s275 + $0xc] sm:$0xf]
        %v303 = vld [vmem:[%s275 + $0x10] sm:$0xf]
        %v304 = vld [vmem:[%s275 + $0x14] sm:$0xf]
        %v305 = vld [vmem:[%s275 + $0x18] sm:$0xf]
        %v306 = vld [vmem:[%s275 + $0x1c] sm:$0xf]
        %v307 = vld [vmem:[%s275 + $0x20] sm:$0xf]
        %v308 = vld [vmem:[%s275 + $0x24] sm:$0xf]
        %v309 = vld [vmem:[%s275 + $0x28] sm:$0xf]
        %v310 = vld [vmem:[%s275 + $0x2c] sm:$0xf]
        %v311 = vld [vmem:[%s275 + $0x30] sm:$0xf]
        %v312 = vld [vmem:[%s275 + $0x34] sm:$0xf]
        %v313 = vld [vmem:[%s275 + $0x38] sm:$0xf]
        %v314 = vld [vmem:[%s275 + $0x3c] sm:$0xf]
        %v315 = vld [vmem:[%s275 + $0x40] sm:$0xf]
        %v316 = vld [vmem:[%s275 + $0x44] sm:$0xf]
        %v317 = vld [vmem:[%s275 + $0x48] sm:$0xf]
        %v318 = vld [vmem:[%s275 + $0x4c] sm:$0xf]
        %v319 = vld [vmem:[%s275 + $0x50] sm:$0xf]
        %v320 = vld [vmem:[%s275 + $0x54] sm:$0xf]
        %v321 = vld [vmem:[%s275 + $0x58] sm:$0xf]
        %v322 = vld [vmem:[%s275 + $0x5c] sm:$0xf]
        %v323 = vld [vmem:[%s275 + $0x60] sm:$0xf]
        %v324 = vld [vmem:[%s275 + $0x64] sm:$0xf]
        %v325 = vld [vmem:[%s275 + $0x68] sm:$0xf]
        %v326 = vld [vmem:[%s275 + $0x6c] sm:$0xf]
        %v327 = vld [vmem:[%s275 + $0x70] sm:$0xf]
        %v328 = vld [vmem:[%s275 + $0x74] sm:$0xf]
        %v329 = vld [vmem:[%s275 + $0x78] sm:$0xf]
        %v330 = vld [vmem:[%s275 + $0x7c] sm:$0xf]
        %v331 = vld [vmem:[%s275 + $0x80] sm:$0xf]
        %v332 = vld [vmem:[%s275 + $0x84] sm:$0xf]
        %v333 = vld [vmem:[%s275 + $0x88] sm:$0xf]
        %v334 = vld [vmem:[%s275 + $0x8c] sm:$0xf]
        %v351 = vunpack.c.l.b16 %v283
        %v352 = vunpack.c.h.b16 %v283
        %v353 = vunpack.c.l.b16 %v284
        %v354 = vunpack.c.l.b16 %v285
        %v355 = vunpack.c.h.b16 %v285
        %v356 = vunpack.c.l.b16 %v286
        %v357 = vunpack.c.l.b16 %v287
        %v358 = vunpack.c.h.b16 %v287
        %v359 = vunpack.c.l.b16 %v288
        %v360 = vunpack.c.l.b16 %v289
        %v361 = vunpack.c.h.b16 %v289
        %v362 = vunpack.c.l.b16 %v290
        %v363 = vunpack.c.l.b16 %v291
        %v364 = vunpack.c.h.b16 %v291
        %v365 = vunpack.c.l.b16 %v292
        %v366 = vunpack.c.l.b16 %v293
        %v367 = vunpack.c.h.b16 %v293
        %v368 = vunpack.c.l.b16 %v294
        %v369 = vunpack.c.l.b16 %v295
        %v370 = vunpack.c.h.b16 %v295
        %v371 = vunpack.c.l.b16 %v296
        %v372 = vunpack.c.l.b16 %v297
        %v373 = vunpack.c.h.b16 %v297
        %v374 = vunpack.c.l.b16 %v298
        %v375 = vpack.c.b16 %v354, %v351
        %v376 = vpack.c.b16 %v355, %v352
        %v377 = vpack.c.b16 %v356, %v353
        %v378 = vpack.c.b16 %v360, %v357
        %v379 = vpack.c.b16 %v361, %v358
        %v380 = vpack.c.b16 %v362, %v359
        %v381 = vpack.c.b16 %v366, %v363
        %v382 = vpack.c.b16 %v367, %v364
        %v383 = vpack.c.b16 %v368, %v365
        %v384 = vpack.c.b16 %v372, %v369
        %v385 = vpack.c.b16 %v373, %v370
        %v386 = vpack.c.b16 %v374, %v371
        %v431 = vunpack.c.l.b16 %v299
        %v432 = vunpack.c.l.b16 %v300
        %v433 = vunpack.c.l.b16 %v301
        %v434 = vunpack.c.l.b16 %v302
        %v435 = vunpack.c.l.b16 %v303
        %v436 = vunpack.c.l.b16 %v304
        %v437 = vunpack.c.l.b16 %v305
        %v438 = vunpack.c.l.b16 %v306
        %v439 = vunpack.c.l.b16 %v307
        %v440 = vunpack.c.l.b16 %v308
        %v441 = vunpack.c.l.b16 %v309
        %v442 = vunpack.c.l.b16 %v310
        %v443 = vunpack.c.l.b16 %v311
        %v444 = vunpack.c.l.b16 %v312
        %v445 = vunpack.c.l.b16 %v313
        %v446 = vunpack.c.l.b16 %v314
        %v447 = vunpack.c.l.b16 %v315
        %v448 = vunpack.c.l.b16 %v316
        %v449 = vunpack.c.l.b16 %v317
        %v450 = vunpack.c.l.b16 %v318
        %v451 = vunpack.c.l.b16 %v319
        %v452 = vunpack.c.l.b16 %v320
        %v453 = vunpack.c.l.b16 %v321
        %v454 = vunpack.c.l.b16 %v322
        %v455 = vunpack.c.l.b16 %v323
        %v456 = vunpack.c.l.b16 %v324
        %v457 = vunpack.c.l.b16 %v325
        %v458 = vunpack.c.l.b16 %v326
        %v459 = vunpack.c.l.b16 %v327
        %v460 = vunpack.c.l.b16 %v328
        %v461 = vunpack.c.l.b16 %v329
        %v462 = vunpack.c.l.b16 %v330
        %v463 = vunpack.c.l.b16 %v331
        %v464 = vunpack.c.l.b16 %v332
        %v465 = vunpack.c.l.b16 %v333
        %v466 = vunpack.c.l.b16 %v334
        %v467 = vpack.c.b16 %v432, %v431
        %v468 = vpack.c.b16 %v434, %v433
        %v469 = vpack.c.b16 %v436, %v435
        %v470 = vpack.c.b16 %v438, %v437
        %v471 = vpack.c.b16 %v440, %v439
        %v472 = vpack.c.b16 %v442, %v441
        %v473 = vpack.c.b16 %v444, %v443
        %v474 = vpack.c.b16 %v446, %v445
        %v475 = vpack.c.b16 %v448, %v447
        %v476 = vpack.c.b16 %v450, %v449
        %v477 = vpack.c.b16 %v452, %v451
        %v478 = vpack.c.b16 %v454, %v453
        %v479 = vpack.c.b16 %v456, %v455
        %v480 = vpack.c.b16 %v458, %v457
        %v481 = vpack.c.b16 %v460, %v459
        %v482 = vpack.c.b16 %v462, %v461
        %v483 = vpack.c.b16 %v464, %v463
        %v484 = vpack.c.b16 %v466, %v465
        %vm503 = vcmask 261120
        %v505 = vsel %vm503, %v377, 0
        %v508 = vsel %vm503, %v380, 0
        %v511 = vsel %vm503, %v383, 0
        %v514 = vsel %vm503, %v386, 0
        %516 = vmatpush.bf16.msra.mxu0 %v474
        %517 = vmatpush.bf16.msra.mxu0 %v473
        %518 = vmatpush.bf16.msra.mxu0 %v472
        %519 = vmatpush.bf16.msra.mxu0 %v471
        %520 = vmatpush.bf16.msra.mxu0 %v470
        %521 = vmatpush.bf16.msra.mxu0 %v469
        %522 = vmatpush.bf16.msra.mxu0 %v468
        %523 = vmatpush.bf16.msra.mxu0 %v467
        %524 = vmatmul.bf16.gmra.mxu0 %v375
        %v525 = vpop.f32.mrf.mxu0
        %v526 = vadd.f32 0.0, %v525
        %v527 = vpop.f32.mrf.mxu0
        %v528 = vadd.f32 0.0, %v527
        %529 = vmatmul.bf16.gmra.mxu0 %v378
        %v530 = vpop.f32.mrf.mxu0
        %v531 = vadd.f32 0.0, %v530
        %v532 = vpop.f32.mrf.mxu0
        %v533 = vadd.f32 0.0, %v532
        %534 = vmatmul.bf16.gmra.mxu0 %v381
        %v535 = vpop.f32.mrf.mxu0
        %v536 = vadd.f32 0.0, %v535
        %v537 = vpop.f32.mrf.mxu0
        %v538 = vadd.f32 0.0, %v537
        %539 = vmatmul.bf16.gmra.mxu0 %v384
        %v540 = vpop.f32.mrf.mxu0
        %v541 = vadd.f32 0.0, %v540
        %v542 = vpop.f32.mrf.mxu0
        %v543 = vadd.f32 0.0, %v542
        %544 = vdwg.mxu0
        %545 = vmatpush.bf16.msra.mxu0 %v482
        %546 = vmatpush.bf16.msra.mxu0 %v481
        %547 = vmatpush.bf16.msra.mxu0 %v480
        %548 = vmatpush.bf16.msra.mxu0 %v479
        %549 = vmatpush.bf16.msra.mxu0 %v478
        %550 = vmatpush.bf16.msra.mxu0 %v477
        %551 = vmatpush.bf16.msra.mxu0 %v476
        %552 = vmatpush.bf16.msra.mxu0 %v475
        %553 = vmatmul.bf16.gmra.mxu0 %v376
        %v554 = vpop.f32.mrf.mxu0
        %v555 = vadd.f32 %v526, %v554
        %v556 = vpop.f32.mrf.mxu0
        %v557 = vadd.f32 %v528, %v556
        %558 = vmatmul.bf16.gmra.mxu0 %v379
        %v559 = vpop.f32.mrf.mxu0
        %v560 = vadd.f32 %v531, %v559
        %v561 = vpop.f32.mrf.mxu0
        %v562 = vadd.f32 %v533, %v561
        %563 = vmatmul.bf16.gmra.mxu0 %v382
        %v564 = vpop.f32.mrf.mxu0
        %v565 = vadd.f32 %v536, %v564
        %v566 = vpop.f32.mrf.mxu0
        %v567 = vadd.f32 %v538, %v566
        %568 = vmatmul.bf16.gmra.mxu0 %v385
        %v569 = vpop.f32.mrf.mxu0
        %v570 = vadd.f32 %v541, %v569
        %v571 = vpop.f32.mrf.mxu0
        %v572 = vadd.f32 %v543, %v571
        %573 = vdwg.mxu0
        %574 = vmatpush.bf16.msra.mxu0 0
        %575 = vmatpush.bf16.msra.mxu0 0
        %576 = vmatpush.bf16.msra.mxu0 0
        %577 = vmatpush.bf16.msra.mxu0 0
        %578 = vmatpush.bf16.msra.mxu0 0
        %579 = vmatpush.bf16.msra.mxu0 0
        %580 = vmatpush.bf16.msra.mxu0 %v484
        %581 = vmatpush.bf16.msra.mxu0 %v483
        %582 = vmatmul.bf16.gmra.mxu0 %v505
        %v583 = vpop.f32.mrf.mxu0
        %v584 = vadd.f32 %v555, %v583
        %v585 = vpop.f32.mrf.mxu0
        %v586 = vadd.f32 %v557, %v585
        %587 = vmatmul.bf16.gmra.mxu0 %v508
        %v588 = vpop.f32.mrf.mxu0
        %v589 = vadd.f32 %v560, %v588
        %v590 = vpop.f32.mrf.mxu0
        %v591 = vadd.f32 %v562, %v590
        %592 = vmatmul.bf16.gmra.mxu0 %v511
        %v593 = vpop.f32.mrf.mxu0
        %v594 = vadd.f32 %v565, %v593
        %v595 = vpop.f32.mrf.mxu0
        %v596 = vadd.f32 %v567, %v595
        %597 = vmatmul.bf16.gmra.mxu0 %v514
        %v598 = vpop.f32.mrf.mxu0
        %v599 = vadd.f32 %v570, %v598
        %v600 = vpop.f32.mrf.mxu0
        %v601 = vadd.f32 %v572, %v600
        %602 = vdwg.mxu0
        %v603 = vld [vmem:[%s2] sm:$0xff]
        %v604 = vld [vmem:[%s2 + $0x8] sm:$0xff]
        %v605 = vld [vmem:[%s2 + $0x10] sm:$0xff]
        %v606 = vld [vmem:[%s2 + $0x18] sm:$0xff]
        %v607 = vld [vmem:[%s2 + $0x20] sm:$0xff]
        %v608 = vld [vmem:[%s2 + $0x28] sm:$0xff]
        %v609 = vld [vmem:[%s2 + $0x30] sm:$0xff]
        %v610 = vld [vmem:[%s2 + $0x38] sm:$0xff]
        %v611 = vld [vmem:[%s278] sm:$0x1]
        %v612 = vld [vmem:[%s281] sm:$0x1]
        %vm613 = vcmask 523264
        %v615 = vsel %vm613, 1.0, 0
        %617 = vmatpush.msra.mxu0 0.0
        %618 = vmatpush.msra.mxu0 0.0
        %619 = vmatpush.msra.mxu0 0.0
        %620 = vmatpush.msra.mxu0 0.0
        %621 = vmatpush.msra.mxu0 0.0
        %622 = vmatpush.msra.mxu0 0.0
        %623 = vmatpush.msra.mxu0 0.0
        %624 = vmatpush.msra.mxu0 0.0
        %625 = vmatpush.msra.mxu0 %v601
        %626 = vmatpush.msra.mxu0 %v599
        %627 = vmatpush.msra.mxu0 %v596
        %628 = vmatpush.msra.mxu0 %v594
        %629 = vmatpush.msra.mxu0 %v591
        %630 = vmatpush.msra.mxu0 %v589
        %631 = vmatpush.msra.mxu0 %v586
        %632 = vmatpush.msra.mxu0 %v584
        %633 = vmatmul.f32.gmra.mxu0 %v615
        %v634 = vpop.f32.mrf.mxu0
        %v635 = vadd.f32 0.0, %v634
        %636 = vdwg.mxu0
        %v638 = vsel %vm613, %v635, 0
        %640 = vmatpush.msra.mxu0 0.0
        %641 = vmatpush.msra.mxu0 0.0
        %642 = vmatpush.msra.mxu0 0.0
        %643 = vmatpush.msra.mxu0 0.0
        %644 = vmatpush.msra.mxu0 0.0
        %645 = vmatpush.msra.mxu0 0.0
        %646 = vmatpush.msra.mxu0 0.0
        %647 = vmatpush.msra.mxu0 0.0
        %648 = vmatpush.msra.mxu0 %v610
        %649 = vmatpush.msra.mxu0 %v609
        %650 = vmatpush.msra.mxu0 %v608
        %651 = vmatpush.msra.mxu0 %v607
        %652 = vmatpush.msra.mxu0 %v606
        %653 = vmatpush.msra.mxu0 %v605
        %654 = vmatpush.msra.mxu0 %v604
        %655 = vmatpush.msra.mxu0 %v603
        %656 = vmatmul.f32.gmra.mxu0 %v638
        %v657 = vpop.f32.mrf.mxu0
        %v658 = vadd.f32 0.0, %v657
        %659 = vdwg.mxu0
        %v660 = vmul.f32 %v658, 0.0078125
        %v662 = vsel %vm503, %v660, 0
        %v665 = vsel %vm503, %v603, 0
        %v668 = vsel %vm503, %v604, 0
        %v671 = vsel %vm503, %v605, 0
        %v674 = vsel %vm503, %v606, 0
        %v677 = vsel %vm503, %v607, 0
        %v680 = vsel %vm503, %v608, 0
        %v683 = vsel %vm503, %v609, 0
        %v686 = vsel %vm503, %v610, 0
        %688 = vmatpush.xpose.msra.mxu0 0.0
        %689 = vmatpush.xpose.msra.mxu0 0.0
        %690 = vmatpush.xpose.msra.mxu0 0.0
        %691 = vmatpush.xpose.msra.mxu0 0.0
        %692 = vmatpush.xpose.msra.mxu0 0.0
        %693 = vmatpush.xpose.msra.mxu0 0.0
        %694 = vmatpush.xpose.msra.mxu0 0.0
        %695 = vmatpush.xpose.msra.mxu0 0.0
        %696 = vmatpush.xpose.msra.mxu0 %v686
        %697 = vmatpush.xpose.msra.mxu0 %v683
        %698 = vmatpush.xpose.msra.mxu0 %v680
        %699 = vmatpush.xpose.msra.mxu0 %v677
        %700 = vmatpush.xpose.msra.mxu0 %v674
        %701 = vmatpush.xpose.msra.mxu0 %v671
        %702 = vmatpush.xpose.msra.mxu0 %v668
        %703 = vmatpush.xpose.msra.mxu0 %v665
        %704 = vmatmul.f32.gmra.mxu0 %v662
        %v705 = vpop.f32.mrf.mxu0
        %v706 = vadd.f32 0.0, %v705
        %707 = vdwg.mxu0
        %v708 = vperm.slane %v706, 0
        %v709 = vsub.f32 %v584, %v708
        %v710 = vsub.f32 %v586, %v708
        %v711 = vsub.f32 %v589, %v708
        %v712 = vsub.f32 %v591, %v708
        %v713 = vsub.f32 %v594, %v708
        %v714 = vsub.f32 %v596, %v708
        %v715 = vsub.f32 %v599, %v708
        %v716 = vsub.f32 %v601, %v708
        %v717 = vmul.f32 %v709, %v709
        %v718 = vmul.f32 %v710, %v710
        %v719 = vmul.f32 %v711, %v711
        %v720 = vmul.f32 %v712, %v712
        %v721 = vmul.f32 %v713, %v713
        %v722 = vmul.f32 %v714, %v714
        %v723 = vmul.f32 %v715, %v715
        %v724 = vmul.f32 %v716, %v716
        %725 = vmatpush.msra.mxu0 0.0
        %726 = vmatpush.msra.mxu0 0.0
        %727 = vmatpush.msra.mxu0 0.0
        %728 = vmatpush.msra.mxu0 0.0
        %729 = vmatpush.msra.mxu0 0.0
        %730 = vmatpush.msra.mxu0 0.0
        %731 = vmatpush.msra.mxu0 0.0
        %732 = vmatpush.msra.mxu0 0.0
        %733 = vmatpush.msra.mxu0 %v724
        %734 = vmatpush.msra.mxu0 %v723
        %735 = vmatpush.msra.mxu0 %v722
        %736 = vmatpush.msra.mxu0 %v721
        %737 = vmatpush.msra.mxu0 %v720
        %738 = vmatpush.msra.mxu0 %v719
        %739 = vmatpush.msra.mxu0 %v718
        %740 = vmatpush.msra.mxu0 %v717
        %741 = vmatmul.f32.gmra.mxu0 %v615
        %v742 = vpop.f32.mrf.mxu0
        %v743 = vadd.f32 0.0, %v742
        %744 = vdwg.mxu0
        %v746 = vsel %vm613, %v743, 0
        %748 = vmatpush.msra.mxu0 0.0
        %749 = vmatpush.msra.mxu0 0.0
        %750 = vmatpush.msra.mxu0 0.0
        %751 = vmatpush.msra.mxu0 0.0
        %752 = vmatpush.msra.mxu0 0.0
        %753 = vmatpush.msra.mxu0 0.0
        %754 = vmatpush.msra.mxu0 0.0
        %755 = vmatpush.msra.mxu0 0.0
        %756 = vmatpush.msra.mxu0 %v610
        %757 = vmatpush.msra.mxu0 %v609
        %758 = vmatpush.msra.mxu0 %v608
        %759 = vmatpush.msra.mxu0 %v607
        %760 = vmatpush.msra.mxu0 %v606
        %761 = vmatpush.msra.mxu0 %v605
        %762 = vmatpush.msra.mxu0 %v604
        %763 = vmatpush.msra.mxu0 %v603
        %764 = vmatmul.f32.gmra.mxu0 %v746
        %v765 = vpop.f32.mrf.mxu0
        %v766 = vadd.f32 0.0, %v765
        %767 = vdwg.mxu0
        %v768 = vmul.f32 %v766, 0.0078125
        %v770 = vsel %vm503, %v768, 0
        %772 = vmatpush.xpose.msra.mxu0 0.0
        %773 = vmatpush.xpose.msra.mxu0 0.0
        %774 = vmatpush.xpose.msra.mxu0 0.0
        %775 = vmatpush.xpose.msra.mxu0 0.0
        %776 = vmatpush.xpose.msra.mxu0 0.0
        %777 = vmatpush.xpose.msra.mxu0 0.0
        %778 = vmatpush.xpose.msra.mxu0 0.0
        %779 = vmatpush.xpose.msra.mxu0 0.0
        %780 = vmatpush.xpose.msra.mxu0 %v686
        %781 = vmatpush.xpose.msra.mxu0 %v683
        %782 = vmatpush.xpose.msra.mxu0 %v680
        %783 = vmatpush.xpose.msra.mxu0 %v677
        %784 = vmatpush.xpose.msra.mxu0 %v674
        %785 = vmatpush.xpose.msra.mxu0 %v671
        %786 = vmatpush.xpose.msra.mxu0 %v668
        %787 = vmatpush.xpose.msra.mxu0 %v665
        %788 = vmatmul.f32.gmra.mxu0 %v770
        %v789 = vpop.f32.mrf.mxu0
        %v790 = vadd.f32 1e-05, %v789
        %791 = vdwg.mxu0
        %v792 = vrsqrt.pop %v790
        %v793 = vmul.f32 %v792, %v790
        %v794 = vmul.f32 %v793, %v792
        %v795 = vmul.f32 0.5, %v794
        %v796 = vsub.f32 1.5, %v795
        %v797 = vmul.f32 %v792, %v796
        %vm798 = vweird.f32 %v790
        %vm799 = vweird.f32 %v792
        %vm800 = vmor %vm798, %vm799
        %v801 = vsel %vm800, %v792, %v797
        %v802 = vmul.f32 %v611, %v801
        %v804 = vperm.slane %v802, 0
        %v806 = vmul.f32 %v709, %v804
        %v807 = vmul.f32 %v710, %v804
        %v808 = vmul.f32 %v711, %v804
        %v809 = vmul.f32 %v712, %v804
        %v810 = vmul.f32 %v713, %v804
        %v811 = vmul.f32 %v714, %v804
        %v812 = vmul.f32 %v715, %v804
        %v813 = vmul.f32 %v716, %v804
        %v815 = vperm.slane %v612, 0
        %v817 = vadd.f32 %v806, %v815
        %v818 = vadd.f32 %v807, %v815
        %v819 = vadd.f32 %v808, %v815
        %v820 = vadd.f32 %v809, %v815
        %v821 = vadd.f32 %v810, %v815
        %v822 = vadd.f32 %v811, %v815
        %v823 = vadd.f32 %v812, %v815
        %v824 = vadd.f32 %v813, %v815
        %v825 = vmax.f32 %v817, 0.0
        %v826 = vmax.f32 %v818, 0.0
        %v827 = vmax.f32 %v819, 0.0
        %v828 = vmax.f32 %v820, 0.0
        %v829 = vmax.f32 %v821, 0.0
        %v830 = vmax.f32 %v822, 0.0
        %v831 = vmax.f32 %v823, 0.0
        %v832 = vmax.f32 %v824, 0.0
        %v833 = vpack.c.bf16 %v825, %v825
        %v834 = vpack.c.bf16 %v826, %v826
        %v835 = vpack.c.bf16 %v827, %v827
        %v836 = vpack.c.bf16 %v828, %v828
        %v837 = vpack.c.bf16 %v829, %v829
        %v838 = vpack.c.bf16 %v830, %v830
        %v839 = vpack.c.bf16 %v831, %v831
        %v840 = vpack.c.bf16 %v832, %v832
        %vm841 = vcmask 519168
        %842 = vst.msk [vmem:[%s266] sm:$0xf] %vm841, %v833
        %843 = vst.msk [vmem:[%s266 + $0x4] sm:$0xf] %vm841, %v834
        %844 = vst.msk [vmem:[%s266 + $0x8] sm:$0xf] %vm841, %v835
        %845 = vst.msk [vmem:[%s266 + $0xc] sm:$0xf] %vm841, %v836
        %846 = vst.msk [vmem:[%s266 + $0x10] sm:$0xf] %vm841, %v837
        %847 = vst.msk [vmem:[%s266 + $0x14] sm:$0xf] %vm841, %v838
        %848 = vst.msk [vmem:[%s266 + $0x18] sm:$0xf] %vm841, %v839
        %849 = vst.msk [vmem:[%s266 + $0x1c] sm:$0xf] %vm841, %v840
        %s850 = sand.u32 %s166, 1
        %s851 = scalar_lea.sflag [#allocation3], %s850
        %s852 = sand.u32 %s166, 1
        %s853 = smul.addr %s852, 32
        %s854 = scalar_lea.vmem [#allocation2], %s853
        // Predicated region
        $region41: #{tpu_custom_call.1} parent=39 // pred_check
          %p855 = pneg %p176
        $region42: #{tpu_custom_call.1} parent=39 // pred_check_branch
          %857 = sbr.rel (%p855) target = $region44
        $region43: #{tpu_custom_call.1} parent=39 // pred_region
          %859 = vsyncadd %s851, 0
          %s860 = smul.addr %s23, 8
          %s861 = sadd.s32 %s24, %s860
          %s862 = smul.addr %s861, 4
          %s863 = scalar_lea.hbm %s5, %s862
          %s864 = sshll.u32 %s854, 4
          %s865 = int_to_ptr.vmem [resolvable:$true] %s864
          %s866 = sshll.u32 %s863, 4
          %s867 = int_to_ptr.hbm [resolvable:$true] %s866
          %872 = dma.vmem_to_hbm [thread:$0]  %s865, 512, %s867, %s851, 64, 64, 4
        $region44: #{tpu_custom_call.1} parent=39 // pred_fallthru
          _
      $region40: #{tpu_custom_call.1} parent=5 // pred_fallthru
        _
      %p873 = scmp.le.s32.totalorder 2, %s14
      // Predicated region
      $region45: #{tpu_custom_call.1} parent=5 // pred_check
        %p874 = pneg %p873
      $region46: #{tpu_custom_call.1} parent=5 // pred_check_branch
        %876 = sbr.rel (%p874) target = $region48
      $region47: #{tpu_custom_call.1} parent=5 // pred_region
        %s877 = ssub.s32 %s14, 2
        // Predicated region
        $region49: #{tpu_custom_call.1} parent=47 // pred_check
          %p878 = pneg %p182
        $region50: #{tpu_custom_call.1} parent=47 // pred_check_branch
          %880 = sbr.rel (%p878) target = $region52
        $region51: #{tpu_custom_call.1} parent=47 // pred_region
          %s881 = sand.u32 %s167, 1
          %s882 = scalar_lea.sflag [#allocation3], %s881
          %s883 = sand.u32 %s167, 1
          %s884 = smul.addr %s883, 32
          %s885 = scalar_lea.vmem [#allocation2], %s884
          %887 = dma.done %s882, 512
        $region52: #{tpu_custom_call.1} parent=47 // pred_fallthru
          _
      $region48: #{tpu_custom_call.1} parent=5 // pred_fallthru
        _
    $region6: #{tpu_custom_call.1} parent=1 // loop_footer
      %s18 = sadd.s32 1, %s14
    $region7: #{tpu_custom_call.1} parent=1 // loop_footer_branch
      %13 = sbr.rel target = $region3
    $region8: #{tpu_custom_call.1} parent=1 // loop_exit
      _
    %888 = vsyncpa [#allocation3], 1
    %s889 = scalar_lea.sflag [#allocation3], 1
    %890 = vsyncpa %s889, 1

</llo_original>
